<compile_context>
chip_gen: v6e
topology: v6e:2x2x1
jax: 0.10.0
libtpu: 0.0.40
codegen_flags: <defaults>
</compile_context>

<pallas_src>
import jax
import jax.numpy as jnp
from jax.experimental import pallas as pl
from jax.experimental.pallas import tpu as pltpu


def _round_up(n: int, m: int) -> int:
    return ((n + m - 1) // m) * m


def _cdiv(a: int, b: int) -> int:
    return -(-a // b)


# --------------------------------------------------------------------------
# Kernel: one fused matmul + bias per (tb, out_pad) output tile.
# --------------------------------------------------------------------------
def _fused_linear_kernel(x_ref, w_ref, b_ref, out_ref):
    # x_ref:  (tb, in_dim)        current batch tile
    # w_ref:  (in_dim, out_pad)   VMEM-resident fused weight (constant index_map)
    # b_ref:  (1, out_pad) f32    VMEM-resident fused bias
    # out_ref:(tb, out_pad)       lane-dense output tile
    out_ref[...] = (
        jnp.dot(x_ref[...], w_ref[...], preferred_element_type=jnp.float32)
        + b_ref[...]
    ).astype(out_ref.dtype)


# --------------------------------------------------------------------------
# One-time parameter preparation (hoisted out of the per-call forward).
# --------------------------------------------------------------------------
def prepare_params(params, *, compute_dtype=jnp.float32):
    """Fuse the three Linears into (W_eff, b_eff), pad the class axis to 128."""
    w1, b1 = params["w1"], params["b1"]    # (h1, in_dim), (h1,)
    w2, b2 = params["w2"], params["b2"]    # (h2, h1),     (h2,)
    w3, b3 = params["w3"], params["b3"]    # (out, h2),    (out,)

    in_dim = w1.shape[1]
    out_dim = w3.shape[0]
    out_pad = _round_up(out_dim, 128)      # lane-dense output width

    f32 = jnp.float32
    hi = jax.lax.Precision.HIGHEST         # one-time cost; keep fusion accurate

    w1t = w1.T.astype(f32)                 # (in_dim, h1)
    w2t = w2.T.astype(f32)                 # (h1, h2)
    w3t = w3.T.astype(f32)                 # (h2, out_dim)

    w_eff = jnp.dot(jnp.dot(w1t, w2t, precision=hi), w3t, precision=hi)
    b_eff = (
        jnp.dot(
            jnp.dot(b1.astype(f32)[None, :], w2t, precision=hi)
            + b2.astype(f32)[None, :],
            w3t, precision=hi,
        )
        + b3.astype(f32)[None, :]
    )                                       # (1, out_dim)

    w_eff_p = jnp.zeros((in_dim, out_pad), compute_dtype).at[:, :out_dim].set(
        w_eff.astype(compute_dtype))
    b_eff_p = jnp.zeros((1, out_pad), f32).at[:, :out_dim].set(b_eff)

    return {
        "w_eff": w_eff_p,
        "b_eff": b_eff_p,
        "in_dim": in_dim,
        "out_dim": out_dim,
        "out_pad": out_pad,
        "compute_dtype": compute_dtype,
    }


# --------------------------------------------------------------------------
# Forward pass.
# --------------------------------------------------------------------------
def simplenet_forward(x, prepared, *, block_b: int = 1024,
                      out_dtype=jnp.float32,
                      vmem_limit_bytes: int = 32 * 1024 * 1024):
    """x: (..., in_dim); returns (B, out_dim) in out_dtype."""
    w_eff = prepared["w_eff"]
    b_eff = prepared["b_eff"]
    in_dim = prepared["in_dim"]
    out_dim = prepared["out_dim"]
    out_pad = prepared["out_pad"]
    compute_dtype = prepared["compute_dtype"]

    itemsize = jnp.dtype(compute_dtype).itemsize
    out_itemsize = jnp.dtype(out_dtype).itemsize

    x2d = x.reshape(-1, in_dim).astype(compute_dtype)
    b = x2d.shape[0]

    # Dtype-correct sublane multiple: 8 for 4-byte, 16 for 2-byte dtypes;
    # once B >= 128 prefer a multiple of 128 (unmasked vst, MXU M-cadence).
    sub = {4: 8, 2: 16, 1: 32}.get(itemsize, 8)
    m = 128 if b >= 128 else sub

    # VMEM budget for the batch tile: double-buffered x and out tiles plus the
    # resident fused weight/bias (counted double-buffered, conservative).
    weight_bytes = 2 * (in_dim * out_pad * itemsize + out_pad * 4)
    budget = (vmem_limit_bytes * 3) // 4
    per_row = 2 * (in_dim * itemsize + out_pad * out_itemsize)
    avail = max(budget - weight_bytes, per_row * m)
    tb_cap = max(((avail // per_row) // m) * m, m)

    tb = min(_round_up(min(block_b, b), m), tb_cap)
    # v7x has 2 TensorCores: whenever there is more than one tile of work, make
    # sure the "parallel" batch axis has >= 2 grid steps so both cores get work.
    if b > m:
        tb = min(tb, _round_up(_cdiv(b, 2), m))
    tb = max(tb, m)

    bp = _round_up(b, tb)
    if bp != b:
        x2d = jnp.pad(x2d, ((0, bp - b), (0, 0)))

    grid = (bp // tb,)
    const = lambda i: (0, 0)   # fused weight / bias: same block every grid step

    cost = pl.CostEstimate(
        flops=2 * bp * in_dim * out_pad,
        transcendentals=0,
        bytes_accessed=(bp * in_dim * itemsize          # x read
                        + in_dim * out_pad * itemsize   # fused weight read
                        + out_pad * 4                   # fused bias read
                        + bp * out_pad * out_itemsize), # output write
    )

    out = pl.pallas_call(
        _fused_linear_kernel,
        out_shape=jax.ShapeDtypeStruct((bp, out_pad), out_dtype),
        grid=grid,
        in_specs=[
            pl.BlockSpec((tb, in_dim), lambda i: (i, 0)),    # x tile
            pl.BlockSpec((in_dim, out_pad), const),          # W_eff (resident)
            pl.BlockSpec((1, out_pad), const),               # b_eff (resident)
        ],
        out_specs=pl.BlockSpec((tb, out_pad), lambda i: (i, 0)),
        compiler_params=pltpu.CompilerParams(
            dimension_semantics=("parallel",),               # megacore on v7x
            vmem_limit_bytes=vmem_limit_bytes),
        cost_estimate=cost,
    )(x2d, w_eff, b_eff)

    return out[:b, :out_dim]


# --------------------------------------------------------------------------
# Init + reference (PyTorch parity check).
# --------------------------------------------------------------------------
def init_params(key, in_dim, n_hidden_1, n_hidden_2, out_dim):
    """PyTorch-default-style uniform(+/- 1/sqrt(fan_in)) init."""
    k1, k2, k3, k4, k5, k6 = jax.random.split(key, 6)

    def u(k, shape, fan_in):
        bound = 1.0 / jnp.sqrt(jnp.float32(fan_in))
        return jax.random.uniform(k, shape, jnp.float32, -bound, bound)

    return {
        "w1": u(k1, (n_hidden_1, in_dim), in_dim),
        "b1": u(k2, (n_hidden_1,), in_dim),
        "w2": u(k3, (n_hidden_2, n_hidden_1), n_hidden_1),
        "b2": u(k4, (n_hidden_2,), n_hidden_1),
        "w3": u(k5, (out_dim, n_hidden_2), n_hidden_2),
        "b3": u(k6, (out_dim,), n_hidden_2),
    }


def _reference(x, params):
    h1 = x @ params["w1"].T + params["b1"]
    h2 = h1 @ params["w2"].T + params["b2"]
    return h2 @ params["w3"].T + params["b3"]


if __name__ == "__main__":
    IN_DIM, H1, H2, OUT_DIM = 64, 128, 64, 10
    B = 16

    key = jax.random.PRNGKey(0)
    kx, kp = jax.random.split(key)
    x = jax.random.normal(kx, (B, IN_DIM), jnp.float32)
    params = init_params(kp, IN_DIM, H1, H2, OUT_DIM)

    prepared = prepare_params(params)        # one-time (hoisted out of forward)
    out = simplenet_forward(x, prepared)
    out = jax.block_until_ready(out)

    ref = _reference(x, params)
    assert out.shape == (B, OUT_DIM)
    # Tolerance covers fused-vs-per-layer rounding and MXU f32 decomposition.
    assert jnp.allclose(out, ref, atol=2e-2, rtol=2e-2), "mismatch vs reference"
    print("KERNEL_OK")
</pallas_src>

<mosaic_0001>
module attributes {stable_mosaic.version = 11 : i64} {
  func.func @_fused_linear_kernel(%arg0: i32, %arg1: memref<8x64xf32, #tpu.memory_space<vmem>>, %arg2: memref<64x128xf32, #tpu.memory_space<vmem>>, %arg3: memref<1x128xf32, #tpu.memory_space<vmem>>, %arg4: memref<8x128xf32, #tpu.memory_space<vmem>>) attributes {dimension_semantics = [#tpu.dimension_semantics<parallel>], iteration_bounds = array<i64: 2>, scalar_prefetch = 0 : i64, scratch_operands = 0 : i64, tpu.core_type = #tpu.core_type<tc>, window_params = [{transform_indices = @transform_0, window_bounds = array<i64: 8, 64>}, {pipeline_mode = #tpu.pipeline_mode<synchronous>, transform_indices = @transform_1, window_bounds = array<i64: 64, 128>}, {pipeline_mode = #tpu.pipeline_mode<synchronous>, transform_indices = @transform_2, window_bounds = array<i64: 1, 128>}, {transform_indices = @transform_3, window_bounds = array<i64: 8, 128>}]} {
    %c0 = arith.constant 0 : index
    %c0_0 = arith.constant 0 : index
    %0 = vector.load %arg1[%c0, %c0_0] : memref<8x64xf32, #tpu.memory_space<vmem>>, vector<8x64xf32>
    %c0_1 = arith.constant 0 : index
    %c0_2 = arith.constant 0 : index
    %1 = vector.load %arg2[%c0_1, %c0_2] : memref<64x128xf32, #tpu.memory_space<vmem>>, vector<64x128xf32>
    %cst = arith.constant dense<0.000000e+00> : vector<8x128xf32>
    %2 = tpu.matmul %0, %1, %cst {dimension_numbers = #tpu.dot_dimension_numbers<[1], [0], [0], [1], [0, 0, 1, 1], [], []>} : vector<8x64xf32>, vector<64x128xf32>, vector<8x128xf32> -> vector<8x128xf32>
    %c0_3 = arith.constant 0 : index
    %c0_4 = arith.constant 0 : index
    %3 = vector.load %arg3[%c0_3, %c0_4] : memref<1x128xf32, #tpu.memory_space<vmem>>, vector<1x128xf32>
    %4 = vector.broadcast %3 : vector<1x128xf32> to vector<8x128xf32>
    %5 = arith.addf %2, %4 : vector<8x128xf32>
    %c0_5 = arith.constant 0 : index
    %c0_6 = arith.constant 0 : index
    %6 = vector.load %arg4[%c0_5, %c0_6] : memref<8x128xf32, #tpu.memory_space<vmem>>, vector<8x128xf32>
    tpu.vector_store %arg4[%c0_5, %c0_6], %5 {strides = array<i32>} : memref<8x128xf32, #tpu.memory_space<vmem>>, vector<8x128xf32>,
    return
  }
  func.func @transform_0(%arg0: i32) -> (i32, i32) {
    %c0_i32 = arith.constant 0 : i32
    %c0_i32_0 = arith.constant 0 : i32
    return %arg0, %c0_i32 : i32, i32
  }
  func.func @transform_1(%arg0: i32) -> (i32, i32) {
    %c0_i32 = arith.constant 0 : i32
    %c0_i32_0 = arith.constant 0 : i32
    %c0_i32_1 = arith.constant 0 : i32
    return %c0_i32, %c0_i32_0 : i32, i32
  }
  func.func @transform_2(%arg0: i32) -> (i32, i32) {
    %c0_i32 = arith.constant 0 : i32
    %c0_i32_0 = arith.constant 0 : i32
    %c0_i32_1 = arith.constant 0 : i32
    return %c0_i32, %c0_i32_0 : i32, i32
  }
  func.func @transform_3(%arg0: i32) -> (i32, i32) {
    %c0_i32 = arith.constant 0 : i32
    %c0_i32_0 = arith.constant 0 : i32
    return %arg0, %c0_i32 : i32, i32
  }
}

</mosaic_0001>

<llo_original>
// kernel: tpu_custom_call.1
$region0: #{tpu_custom_call.1}
  #allocation0 [shape = 'u32[]', space=smem, size = 0x4, offset = 0x4, fixed_abs, tag = 'smem constant byte address 0x4 - core index']
  #allocation1 [shape = 'u32[144,128]{1,0:T(1,128)}', space=vmem, size = 0x12000, scoped, tag = 'internal scratch']
  %s0 = inlined_call_operand.hbm [shape: f32[16,64], index: 0, kind: input, shape index: {}]
  %s1 = inlined_call_operand.hbm [shape: f32[64,128], index: 1, kind: input, shape index: {}]
  %s2 = inlined_call_operand.vmem [shape: f32[1,128], index: 2, kind: input, shape index: {}]
  %s3 = inlined_call_operand.hbm [shape: f32[16,128], index: 3, kind: output, shape index: {}]
  %s4 = sld [smem:[#allocation0]]
  $region53: #{tpu_custom_call.1} parent=0
    _
  %s6 = ssub.s32 1, %s4
  %s7 = scalar_select 0, %s6, %s4
  $region1: #{tpu_custom_call.1} parent=0
    #allocation2 [shape = 'u8[8192]{0}', space=vmem, size = 0x2000, scoped, tag = 'input window, operand 0']
    #allocation3 [shape = 's32[2]{0}', space=sflag, size = 0x8, scoped, tag = 'scoped memory for tpu_custom_call.1']
    #allocation4 [shape = 's32[2]{0}', space=sflag, size = 0x8, scoped, tag = 'scoped memory for tpu_custom_call.1']
    #allocation5 [shape = 'u8[32768]{0}', space=vmem, size = 0x8000, scoped, tag = 'input window, operand 1, single buffered']
    #allocation6 [shape = 's32[1]{0}', space=sflag, size = 0x4, scoped, tag = 'scoped memory for tpu_custom_call.1']
    #allocation7 [shape = 'u8[8192]{0}', space=vmem, size = 0x2000, scoped, tag = 'output window, operand 0']
    %8 = vsyncpa [#allocation3], 0
    %s9 = scalar_lea.sflag [#allocation3], 1
    %10 = vsyncpa %s9, 0
    %11 = vsyncpa [#allocation6], 0
    %12 = vsyncpa [#allocation4], 0
    %s13 = scalar_lea.sflag [#allocation4], 1
    %14 = vsyncpa %s13, 0
    loop: start=0, step=1, limit=4
    $region2: #{tpu_custom_call.1} parent=1 // loop_pre_header
      _
    $region3: #{tpu_custom_call.1} parent=1 // loop_header
      %s16 = sphi 0, %s20
      %p17 = scmp.ge.s32.totalorder %s16, 4
      %s26 = sphi 0, %s28
      %s29 = sphi 0, %s26
      %s30 = sphi 0, %s29
      %s46 = sphi 0, %s30
      %s50 = sphi 0, %s50
      %s52 = sphi 0, %s50
      %s53 = sphi 0, %s52
      %s67 = sphi 0, %s53
      %s71 = sphi 0, %s71
      %s73 = sphi 0, %s71
      %s74 = sphi 0, %s73
      %s88 = sphi 0, %s74
      %s94 = sphi 0, %s96
      %s97 = sphi 0, %s94
      %s98 = sphi 0, %s97
      %s114 = sphi 0, %s98
    $region4: #{tpu_custom_call.1} parent=1 // loop_header_branch
      %19 = sbr.rel (%p17) target = $region8
    $region5: #{tpu_custom_call.1} parent=1 // loop_body
      %s21 = ssub.s32 %s16, 1
      %s22 = ssub.s32 %s16, 2
      %s23 = sadd.s32 %s16, 1
      %s24 = ssub.s32 %s16, %s23
      %p25 = scmp.eq.s32.totalorder %s24, 0
      %s27 = sadd.s32 %s26, 1
      %s28 = scalar_select %p25, %s26, %s27
      %p31 = pneg %p25
      %p32 = scmp.eq.s32.totalorder %s16, 1
      %p33 = por %p31, %p32
      %p34 = scmp.ne.s32.totalorder %s26, %s29
      %p35 = scmp.eq.s32.totalorder %s16, 0
      %p36 = por %p34, %p35
      %p37 = scmp.ne.s32.totalorder %s26, %s29
      %p38 = scmp.eq.s32.totalorder %s21, 1
      %p39 = por %p37, %p38
      %p40 = scmp.ne.s32.totalorder %s29, %s30
      %p41 = scmp.eq.s32.totalorder %s21, 0
      %p42 = por %p40, %p41
      %p43 = scmp.ne.s32.totalorder %s29, %s30
      %p44 = scmp.eq.s32.totalorder %s22, 1
      %p45 = por %p43, %p44
      %p47 = scmp.ne.s32.totalorder %s30, %s46
      %p48 = scmp.eq.s32.totalorder %s22, 0
      %p49 = por %p47, %p48
      %s51 = sadd.s32 %s50, 1
      %p54 = scmp.eq.s32.totalorder %s16, 1
      %p55 = scmp.ne.s32.totalorder %s50, %s52
      %p56 = scmp.eq.s32.totalorder %s16, 0
      %p57 = por %p55, %p56
      %p58 = scmp.ne.s32.totalorder %s50, %s52
      %p59 = scmp.eq.s32.totalorder %s21, 1
      %p60 = por %p58, %p59
      %p61 = scmp.ne.s32.totalorder %s52, %s53
      %p62 = scmp.eq.s32.totalorder %s21, 0
      %p63 = por %p61, %p62
      %p64 = scmp.ne.s32.totalorder %s52, %s53
      %p65 = scmp.eq.s32.totalorder %s22, 1
      %p66 = por %p64, %p65
      %p68 = scmp.ne.s32.totalorder %s53, %s67
      %p69 = scmp.eq.s32.totalorder %s22, 0
      %p70 = por %p68, %p69
      %s72 = sadd.s32 %s71, 1
      %p75 = scmp.eq.s32.totalorder %s16, 1
      %p76 = scmp.ne.s32.totalorder %s71, %s73
      %p77 = scmp.eq.s32.totalorder %s16, 0
      %p78 = por %p76, %p77
      %p79 = scmp.ne.s32.totalorder %s71, %s73
      %p80 = scmp.eq.s32.totalorder %s21, 1
      %p81 = por %p79, %p80
      %p82 = scmp.ne.s32.totalorder %s73, %s74
      %p83 = scmp.eq.s32.totalorder %s21, 0
      %p84 = por %p82, %p83
      %p85 = scmp.ne.s32.totalorder %s73, %s74
      %p86 = scmp.eq.s32.totalorder %s22, 1
      %p87 = por %p85, %p86
      %p89 = scmp.ne.s32.totalorder %s74, %s88
      %p90 = scmp.eq.s32.totalorder %s22, 0
      %p91 = por %p89, %p90
      %s92 = ssub.s32 %s16, %s23
      %p93 = scmp.eq.s32.totalorder %s92, 0
      %s95 = sadd.s32 %s94, 1
      %s96 = scalar_select %p93, %s94, %s95
      %p99 = pneg %p93
      %p100 = scmp.eq.s32.totalorder %s16, 1
      %p101 = por %p99, %p100
      %p102 = scmp.ne.s32.totalorder %s94, %s97
      %p103 = scmp.eq.s32.totalorder %s16, 0
      %p104 = por %p102, %p103
      %p105 = scmp.ne.s32.totalorder %s94, %s97
      %p106 = scmp.eq.s32.totalorder %s21, 1
      %p107 = por %p105, %p106
      %p108 = scmp.ne.s32.totalorder %s97, %s98
      %p109 = scmp.eq.s32.totalorder %s21, 0
      %p110 = por %p108, %p109
      %p111 = scmp.ne.s32.totalorder %s97, %s98
      %p112 = scmp.eq.s32.totalorder %s22, 1
      %p113 = por %p111, %p112
      %p115 = scmp.ne.s32.totalorder %s98, %s114
      %p116 = scmp.eq.s32.totalorder %s22, 0
      %p117 = por %p115, %p116
      %p118 = scmp.le.s32.totalorder 1, %s16
      %p119 = scmp.lt.s32.totalorder %s16, 3
      %p120 = pnand %p118, %p119
      %p121 = pneg %p120
      // Predicated region
      $region9: #{tpu_custom_call.1} parent=5 // pred_check
        _
      $region10: #{tpu_custom_call.1} parent=5 // pred_check_branch
        %123 = sbr.rel (%p120) target = $region12
      $region11: #{tpu_custom_call.1} parent=5 // pred_region
        %s124 = ssub.s32 %s16, 1
        // Predicated region
        $region13: #{tpu_custom_call.1} parent=11 // pred_check
          %p125 = pneg %p63
        $region14: #{tpu_custom_call.1} parent=11 // pred_check_branch
          %127 = sbr.rel (%p125) target = $region16
        $region15: #{tpu_custom_call.1} parent=11 // pred_region
          %s129 = ssub.s32 1024, 1024
          %130 = vsyncadd [#allocation6], %s129
          %s131 = sshll.u32 [#allocation5], 4
          %s132 = int_to_ptr.vmem [resolvable:$true] %s131
          %137 = dma.hbm_to_vmem [thread:$0]  %s1, 1024, %s132, [#allocation6], 128, 128, 8
        $region16: #{tpu_custom_call.1} parent=11 // pred_fallthru
          _
        // Predicated region
        $region17: #{tpu_custom_call.1} parent=11 // pred_check
          %p138 = pneg %p84
        $region18: #{tpu_custom_call.1} parent=11 // pred_check_branch
          %140 = sbr.rel (%p138) target = $region20
        $region19: #{tpu_custom_call.1} parent=11 // pred_region
          _
        $region20: #{tpu_custom_call.1} parent=11 // pred_fallthru
          _
      $region12: #{tpu_custom_call.1} parent=5 // pred_fallthru
        _
      %p141 = scmp.lt.s32.totalorder %s16, 2
      // Predicated region
      $region21: #{tpu_custom_call.1} parent=5 // pred_check
        %p142 = pneg %p141
      $region22: #{tpu_custom_call.1} parent=5 // pred_check_branch
        %144 = sbr.rel (%p142) target = $region24
      $region23: #{tpu_custom_call.1} parent=5 // pred_region
        // Predicated region
        $region25: #{tpu_custom_call.1} parent=23 // pred_check
          %p145 = pneg %p36
        $region26: #{tpu_custom_call.1} parent=23 // pred_check_branch
          %147 = sbr.rel (%p145) target = $region28
        $region27: #{tpu_custom_call.1} parent=23 // pred_region
          %s148 = sand.u32 %s26, 1
          %s149 = scalar_lea.sflag [#allocation3], %s148
          %s150 = sand.u32 %s26, 1
          %s151 = smul.addr %s150, 8
          %s152 = scalar_lea.vmem [#allocation2], %s151
          %s154 = ssub.s32 128, 128
          %155 = vsyncadd %s149, %s154
          %s156 = smul.addr %s16, 128
          %s157 = scalar_lea.hbm %s0, %s156
          %s159 = sshll.u32 %s152, 4
          %s160 = int_to_ptr.vmem [resolvable:$true] %s159
          %162 = dma.hbm_to_vmem [thread:$0]  %s157, 128, %s160, %s149
        $region28: #{tpu_custom_call.1} parent=23 // pred_fallthru
          _
      $region24: #{tpu_custom_call.1} parent=5 // pred_fallthru
        _
      %p163 = scmp.le.s32.totalorder 1, %s16
      %p164 = scmp.lt.s32.totalorder %s16, 3
      %p165 = pnand %p163, %p164
      %p166 = pneg %p165
      // Predicated region
      $region29: #{tpu_custom_call.1} parent=5 // pred_check
        _
      $region30: #{tpu_custom_call.1} parent=5 // pred_check_branch
        %168 = sbr.rel (%p165) target = $region32
      $region31: #{tpu_custom_call.1} parent=5 // pred_region
        %s169 = ssub.s32 %s16, 1
        %s170 = sand.u32 %s29, 1
        %s171 = scalar_lea.sflag [#allocation3], %s170
        %s172 = sand.u32 %s29, 1
        %s173 = smul.addr %s172, 8
        %s174 = scalar_lea.vmem [#allocation2], %s173
        // Predicated region
        $region33: #{tpu_custom_call.1} parent=31 // pred_check
          %p175 = pneg %p42
        $region34: #{tpu_custom_call.1} parent=31 // pred_check_branch
          %177 = sbr.rel (%p175) target = $region36
        $region35: #{tpu_custom_call.1} parent=31 // pred_region
          %178 = dma.done %s171, 128
        $region36: #{tpu_custom_call.1} parent=31 // pred_fallthru
          _
        // Predicated region
        $region37: #{tpu_custom_call.1} parent=31 // pred_check
          %p179 = pneg %p63
        $region38: #{tpu_custom_call.1} parent=31 // pred_check_branch
          %181 = sbr.rel (%p179) target = $region40
        $region39: #{tpu_custom_call.1} parent=31 // pred_region
          %182 = dma.done [#allocation6], 1024
        $region40: #{tpu_custom_call.1} parent=31 // pred_fallthru
          _
        %s183 = sand.u32 %s29, 1
        %s184 = scalar_lea.sflag [#allocation3], %s183
        %s185 = sand.u32 %s29, 1
        %s186 = smul.addr %s185, 8
        %s187 = scalar_lea.vmem [#allocation2], %s186
        %p188 = pneg %p42
        %p189 = pneg %p39
        %p190 = pneg %p63
        %p191 = pneg %p60
        %p192 = pneg %p84
        %p193 = pneg %p81
        %p194 = pneg %p110
        %p195 = pneg %p107
        %s196 = sand.u32 %s97, 1
        %s197 = scalar_lea.sflag [#allocation4], %s196
        %s198 = sand.u32 %s97, 1
        %s199 = smul.addr %s198, 8
        %s200 = scalar_lea.vmem [#allocation7], %s199
        %v201 = vld [vmem:[%s174] sm:$0xff]
        %v202 = vld [vmem:[#allocation5] sm:$0xff]
        %v203 = vld [vmem:[#allocation5 + $0x8] sm:$0xff]
        %v204 = vld [vmem:[#allocation5 + $0x10] sm:$0xff]
        %v205 = vld [vmem:[#allocation5 + $0x18] sm:$0xff]
        %v206 = vld [vmem:[#allocation5 + $0x20] sm:$0xff]
        %v207 = vld [vmem:[#allocation5 + $0x28] sm:$0xff]
        %v208 = vld [vmem:[#allocation5 + $0x30] sm:$0xff]
        %v209 = vld [vmem:[#allocation5 + $0x38] sm:$0xff]
        %v210 = vld [vmem:[%s2] sm:$0x1]
        %v212 = vlaneseq
        %v213 = vshrl.u32 %v212, 7
        %v214 = vsub.s32 0, %v213
        %v215 = vrot.slane %v210, %v214
        %vm217 = vcmask 523264
        %v219 = vsel %vm217, %v201, 0
        %221 = vmatprep.subr.mxu0 0.0
        %222 = vmatpush1.msra.mxu0 0.0
        %223 = vmatprep.subr.mxu0 0.0
        %224 = vmatpush1.msra.mxu0 0.0
        %225 = vmatprep.subr.mxu0 0.0
        %226 = vmatpush1.msra.mxu0 0.0
        %227 = vmatprep.subr.mxu0 0.0
        %228 = vmatpush1.msra.mxu0 0.0
        %229 = vmatprep.subr.mxu0 0.0
        %230 = vmatpush1.msra.mxu0 0.0
        %231 = vmatprep.subr.mxu0 0.0
        %232 = vmatpush1.msra.mxu0 0.0
        %233 = vmatprep.subr.mxu0 0.0
        %234 = vmatpush1.msra.mxu0 0.0
        %235 = vmatprep.subr.mxu0 0.0
        %236 = vmatpush1.msra.mxu0 0.0
        %237 = vmatprep.subr.mxu0 0.0
        %238 = vmatpush1.msra.mxu0 %v209
        %239 = vmatprep.subr.mxu0 0.0
        %240 = vmatpush1.msra.mxu0 %v208
        %241 = vmatprep.subr.mxu0 0.0
        %242 = vmatpush1.msra.mxu0 %v207
        %243 = vmatprep.subr.mxu0 0.0
        %244 = vmatpush1.msra.mxu0 %v206
        %245 = vmatprep.subr.mxu0 0.0
        %246 = vmatpush1.msra.mxu0 %v205
        %247 = vmatprep.subr.mxu0 0.0
        %248 = vmatpush1.msra.mxu0 %v204
        %249 = vmatprep.subr.mxu0 0.0
        %250 = vmatpush1.msra.mxu0 %v203
        %251 = vmatprep.subr.mxu0 0.0
        %252 = vmatpush1.msra.mxu0 %v202
        %253 = vmatprep.subr.mxu0 0.0
        %254 = vmatpush2.msra.mxu0 0.0
        %255 = vmatprep.subr.mxu0 0.0
        %256 = vmatpush2.msra.mxu0 0.0
        %257 = vmatprep.subr.mxu0 0.0
        %258 = vmatpush2.msra.mxu0 0.0
        %259 = vmatprep.subr.mxu0 0.0
        %260 = vmatpush2.msra.mxu0 0.0
        %261 = vmatprep.subr.mxu0 0.0
        %262 = vmatpush2.msra.mxu0 0.0
        %263 = vmatprep.subr.mxu0 0.0
        %264 = vmatpush2.msra.mxu0 0.0
        %265 = vmatprep.subr.mxu0 0.0
        %266 = vmatpush2.msra.mxu0 0.0
        %267 = vmatprep.subr.mxu0 0.0
        %268 = vmatpush2.msra.mxu0 0.0
        %269 = vmatprep.subr.mxu0 0.0
        %270 = vmatpush2.msra.mxu0 0.0
        %271 = vmatprep.subr.mxu0 0.0
        %272 = vmatpush2.msra.mxu0 0.0
        %273 = vmatprep.subr.mxu0 0.0
        %274 = vmatpush2.msra.mxu0 0.0
        %275 = vmatprep.subr.mxu0 0.0
        %276 = vmatpush2.msra.mxu0 0.0
        %277 = vmatprep.subr.mxu0 0.0
        %278 = vmatpush2.msra.mxu0 0.0
        %279 = vmatprep.subr.mxu0 0.0
        %280 = vmatpush2.msra.mxu0 0.0
        %281 = vmatprep.subr.mxu0 0.0
        %282 = vmatpush2.msra.mxu0 0.0
        %283 = vmatprep.subr.mxu0 0.0
        %284 = vmatpush2.msra.mxu0 0.0
        %285 = vmatprep.mubr.f32.mxu0 0.0
        %286 = vmatmul.mubr.f32.gmra.mxu0 %v219
        %v287 = vpop.f32.mrf.mxu0
        %v288 = vadd.f32 %v215, %v287
        %v289 = vpop.f32.mrf.mxu0
        %290 = vdwg.mxu0
        %291 = vst [vmem:[%s200] sm:$0xff] %v288
        %s292 = sand.u32 %s97, 1
        %s293 = scalar_lea.sflag [#allocation4], %s292
        %s294 = sand.u32 %s97, 1
        %s295 = smul.addr %s294, 8
        %s296 = scalar_lea.vmem [#allocation7], %s295
        // Predicated region
        $region41: #{tpu_custom_call.1} parent=31 // pred_check
          %p297 = pneg %p107
        $region42: #{tpu_custom_call.1} parent=31 // pred_check_branch
          %299 = sbr.rel (%p297) target = $region44
        $region43: #{tpu_custom_call.1} parent=31 // pred_region
          %s301 = ssub.s32 128, 128
          %302 = vsyncadd %s293, %s301
          %s303 = smul.addr %s21, 128
          %s304 = scalar_lea.hbm %s3, %s303
          %s306 = sshll.u32 %s296, 4
          %s307 = int_to_ptr.vmem [resolvable:$true] %s306
          %309 = dma.vmem_to_hbm [thread:$0]  %s307, 128, %s304, %s293
        $region44: #{tpu_custom_call.1} parent=31 // pred_fallthru
          _
      $region32: #{tpu_custom_call.1} parent=5 // pred_fallthru
        _
      %p310 = scmp.le.s32.totalorder 2, %s16
      // Predicated region
      $region45: #{tpu_custom_call.1} parent=5 // pred_check
        %p311 = pneg %p310
      $region46: #{tpu_custom_call.1} parent=5 // pred_check_branch
        %313 = sbr.rel (%p311) target = $region48
      $region47: #{tpu_custom_call.1} parent=5 // pred_region
        %s314 = ssub.s32 %s16, 2
        // Predicated region
        $region49: #{tpu_custom_call.1} parent=47 // pred_check
          %p315 = pneg %p113
        $region50: #{tpu_custom_call.1} parent=47 // pred_check_branch
          %317 = sbr.rel (%p315) target = $region52
        $region51: #{tpu_custom_call.1} parent=47 // pred_region
          %s318 = sand.u32 %s98, 1
          %s319 = scalar_lea.sflag [#allocation4], %s318
          %s320 = sand.u32 %s98, 1
          %s321 = smul.addr %s320, 8
          %s322 = scalar_lea.vmem [#allocation7], %s321
          %323 = dma.done %s319, 128
        $region52: #{tpu_custom_call.1} parent=47 // pred_fallthru
          _
      $region48: #{tpu_custom_call.1} parent=5 // pred_fallthru
        _
    $region6: #{tpu_custom_call.1} parent=1 // loop_footer
      %s20 = sadd.s32 1, %s16
    $region7: #{tpu_custom_call.1} parent=1 // loop_footer_branch
      %15 = sbr.rel target = $region3
    $region8: #{tpu_custom_call.1} parent=1 // loop_exit
      _
    %324 = vsyncpa [#allocation3], 1
    %s325 = scalar_lea.sflag [#allocation3], 1
    %326 = vsyncpa %s325, 1
    %327 = vsyncpa [#allocation6], 1
    %328 = vsyncpa [#allocation4], 1
    %s329 = scalar_lea.sflag [#allocation4], 1
    %330 = vsyncpa %s329, 1

</llo_original>
